<compile_context>
chip_gen: v6e
topology: v6e:2x2x1
jax: 0.10.0
libtpu: 0.0.40
codegen_flags: <defaults>
</compile_context>

<pallas_src>
import functools

import jax
import jax.numpy as jnp
from jax.experimental import pallas as pl
from jax.experimental.pallas import tpu as pltpu

_LANE = 128
_SUBLANE = 8
_NEG_INF = -1e30
_TB_TARGET = 2048  # target rows per batch tile (review: 1024-4096)


def _round_up(n, m):
    return ((n + m - 1) // m) * m


def ann_kernel(x_ref, w1_ref, b1_ref, w2_ref, b2_ref, o_ref):
    # hidden = x @ W1 + b1   (nn.Linear(input_size, hidden_size)); f32 accumulation.
    x = x_ref[...]
    hidden = jnp.dot(x, w1_ref[...], preferred_element_type=jnp.float32)
    hidden = hidden + b1_ref[...].astype(jnp.float32)

    # logits = hidden @ W2 + b2   (nn.Linear(hidden_size, output_size_padded)).
    # If W2 is bf16 the hidden activations are downcast before the second matmul
    # (standard mixed precision; slight precision loss vs. the f32 reference).
    w2 = w2_ref[...]
    h_mm = hidden if w2.dtype == jnp.float32 else hidden.astype(w2.dtype)
    logits = jnp.dot(h_mm, w2, preferred_element_type=jnp.float32)
    logits = logits + b2_ref[...].astype(jnp.float32)

    # Numerically stable LogSoftmax over the last dim.  Padded columns carry a
    # -1e30 bias (kept in f32), so exp(shifted) there is exactly 0 and the real
    # logsumexp is untouched.
    m = jnp.max(logits, axis=-1, keepdims=True)
    shifted = logits - m
    lse = jnp.log(jnp.sum(jnp.exp(shifted), axis=-1, keepdims=True))
    o_ref[...] = (shifted - lse).astype(o_ref.dtype)


@functools.partial(jax.jit, static_argnames=("out_dtype", "unpad", "tb_target"))
def ann_forward(x, w1, b1, w2, b2, *, out_dtype=jnp.float32, unpad=True,
                tb_target=_TB_TARGET):
    """x: [B, In]; w1: [In, H]; b1: [1, H]; w2: [H, O]; b2: [1, O].

    Returns [B, O] log-probs (unpad=True) or the padded [B_pad, 128k] slab
    (unpad=False) for consumers that can handle padding (saves an HBM pass).
    """
    B, In = x.shape
    H = w1.shape[1]
    O = w2.shape[1]

    # --- Lane-dense output: pad output width to a multiple of 128 lanes. ---
    O_pad = _round_up(max(O, _LANE), _LANE)
    if O_pad != O:
        w2 = jnp.pad(w2, ((0, 0), (0, O_pad - O)))  # zero weight columns
        b2 = jnp.pad(b2, ((0, 0), (0, O_pad - O)), constant_values=_NEG_INF)

    # --- Batch tiling: pick tb from the number of tiles (bounds padding to <8
    # rows/tile); force >= 2 tiles for moderately large B so both v7x cores work.
    n_tiles = pl.cdiv(B, tb_target)
    if B >= 2 * _LANE:
        n_tiles = max(n_tiles, 2)
    tb = max(_round_up(pl.cdiv(B, n_tiles), _SUBLANE), _SUBLANE)
    B_pad = tb * n_tiles
    if B_pad != B:
        # Padded rows produce garbage log-probs; they are sliced away below
        # (or must be masked by the consumer when unpad=False).
        x = jnp.pad(x, ((0, B_pad - B), (0, 0)))

    grid = (n_tiles,)

    out_itemsize = jnp.dtype(out_dtype).itemsize
    weight_bytes = (w1.size * w1.dtype.itemsize + b1.size * b1.dtype.itemsize
                    + w2.size * w2.dtype.itemsize + b2.size * b2.dtype.itemsize)

    # Explicit scoped-VMEM budget: double-buffered x + out tiles, resident
    # weights (counted x2 for buffer allocation), plus slack.  Needed mainly so
    # large tiles clear v5e's 16 MiB scoped default.
    vmem_needed = (2 * tb * In * x.dtype.itemsize
                   + 2 * tb * O_pad * out_itemsize
                   + 2 * weight_bytes
                   + (2 << 20))
    vmem_limit = int(min(vmem_needed, 64 << 20))

    cost = pl.CostEstimate(
        flops=2 * B_pad * (In * H + H * O_pad),
        transcendentals=B_pad * (O_pad + 1),  # exp per logit + log per row
        bytes_accessed=(B_pad * In * x.dtype.itemsize
                        + weight_bytes
                        + B_pad * O_pad * out_itemsize),
    )

    out = pl.pallas_call(
        ann_kernel,
        out_shape=jax.ShapeDtypeStruct((B_pad, O_pad), out_dtype),
        grid_spec=pltpu.PrefetchScalarGridSpec(
            num_scalar_prefetch=0,
            grid=grid,
            in_specs=[
                pl.BlockSpec((tb, In), lambda i: (i, 0)),       # x: batch-tiled
                pl.BlockSpec((In, H), lambda i: (0, 0)),        # W1: VMEM-resident
                pl.BlockSpec((1, H), lambda i: (0, 0)),         # b1: VMEM-resident
                pl.BlockSpec((H, O_pad), lambda i: (0, 0)),     # W2: VMEM-resident
                pl.BlockSpec((1, O_pad), lambda i: (0, 0)),     # b2: VMEM-resident
            ],
            out_specs=pl.BlockSpec((tb, O_pad), lambda i: (i, 0)),
        ),
        compiler_params=pltpu.CompilerParams(
            dimension_semantics=("parallel",),  # batch tiles are independent
            vmem_limit_bytes=vmem_limit,
        ),
        cost_estimate=cost,
    )(x, w1, b1, w2, b2)

    if not unpad:
        return out  # padded [B_pad, O_pad]; consumer must ignore padding
    return out[:B, :O]


if __name__ == "__main__":
    # Small synthetic sizes consistent with the module:
    #   n_words (input_size) = 32, hidden_size = 128, n_categories (output_size) = 8
    batch = 2
    input_size = 32
    hidden_size = 128
    output_size = 8

    key = jax.random.PRNGKey(0)
    kx, kw1, kb1, kw2, kb2 = jax.random.split(key, 5)

    x = jax.random.normal(kx, (batch, input_size), dtype=jnp.float32)

    # Deterministic parameter init (PyTorch-style uniform bound 1/sqrt(fan_in))
    bound1 = 1.0 / jnp.sqrt(jnp.float32(input_size))
    w1 = jax.random.uniform(kw1, (input_size, hidden_size), jnp.float32, -bound1, bound1)
    b1 = jax.random.uniform(kb1, (1, hidden_size), jnp.float32, -bound1, bound1)

    bound2 = 1.0 / jnp.sqrt(jnp.float32(hidden_size))
    w2 = jax.random.uniform(kw2, (hidden_size, output_size), jnp.float32, -bound2, bound2)
    b2 = jax.random.uniform(kb2, (1, output_size), jnp.float32, -bound2, bound2)

    # f32 output (tight reference check).
    out = ann_forward(x, w1, b1, w2, b2)
    jax.block_until_ready(out)

    ref_logits = (x @ w1 + b1) @ w2 + b2
    ref = jax.nn.log_softmax(ref_logits, axis=-1)
    assert out.shape == (batch, output_size)
    assert jnp.allclose(out, ref, atol=1e-5, rtol=1e-5), "mismatch vs reference"

    # bf16 output (halved writeback); loose tolerance due to the narrowed store.
    out_bf16 = ann_forward(x, w1, b1, w2, b2, out_dtype=jnp.bfloat16)
    jax.block_until_ready(out_bf16)
    assert out_bf16.shape == (batch, output_size)
    assert jnp.allclose(out_bf16.astype(jnp.float32), ref, atol=3e-2, rtol=3e-2), \
        "bf16-output mismatch vs reference"

    print("KERNEL_OK")
</pallas_src>

<mosaic_0001>
module attributes {stable_mosaic.version = 11 : i64} {
  func.func @ann_kernel(%arg0: i32, %arg1: memref<8x32xf32, #tpu.memory_space<vmem>>, %arg2: memref<32x128xf32, #tpu.memory_space<vmem>>, %arg3: memref<1x128xf32, #tpu.memory_space<vmem>>, %arg4: memref<128x128xf32, #tpu.memory_space<vmem>>, %arg5: memref<1x128xf32, #tpu.memory_space<vmem>>, %arg6: memref<8x128xf32, #tpu.memory_space<vmem>>) attributes {dimension_semantics = [#tpu.dimension_semantics<parallel>], iteration_bounds = array<i64: 1>, scalar_prefetch = 0 : i64, scratch_operands = 0 : i64, tpu.core_type = #tpu.core_type<tc>, window_params = [{transform_indices = @transform_0, window_bounds = array<i64: 8, 32>}, {pipeline_mode = #tpu.pipeline_mode<synchronous>, transform_indices = @transform_1, window_bounds = array<i64: 32, 128>}, {pipeline_mode = #tpu.pipeline_mode<synchronous>, transform_indices = @transform_2, window_bounds = array<i64: 1, 128>}, {pipeline_mode = #tpu.pipeline_mode<synchronous>, transform_indices = @transform_3, window_bounds = array<i64: 128, 128>}, {pipeline_mode = #tpu.pipeline_mode<synchronous>, transform_indices = @transform_4, window_bounds = array<i64: 1, 128>}, {transform_indices = @transform_5, window_bounds = array<i64: 8, 128>}]} {
    %c0 = arith.constant 0 : index
    %c0_0 = arith.constant 0 : index
    %0 = vector.load %arg1[%c0, %c0_0] : memref<8x32xf32, #tpu.memory_space<vmem>>, vector<8x32xf32>
    %c0_1 = arith.constant 0 : index
    %c0_2 = arith.constant 0 : index
    %1 = vector.load %arg2[%c0_1, %c0_2] : memref<32x128xf32, #tpu.memory_space<vmem>>, vector<32x128xf32>
    %cst = arith.constant dense<0.000000e+00> : vector<8x128xf32>
    %2 = tpu.matmul %0, %1, %cst {dimension_numbers = #tpu.dot_dimension_numbers<[1], [0], [0], [1], [0, 0, 1, 1], [], []>} : vector<8x32xf32>, vector<32x128xf32>, vector<8x128xf32> -> vector<8x128xf32>
    %c0_3 = arith.constant 0 : index
    %c0_4 = arith.constant 0 : index
    %3 = vector.load %arg3[%c0_3, %c0_4] : memref<1x128xf32, #tpu.memory_space<vmem>>, vector<1x128xf32>
    %4 = vector.broadcast %3 : vector<1x128xf32> to vector<8x128xf32>
    %5 = arith.addf %2, %4 : vector<8x128xf32>
    %c0_5 = arith.constant 0 : index
    %c0_6 = arith.constant 0 : index
    %6 = vector.load %arg4[%c0_5, %c0_6] : memref<128x128xf32, #tpu.memory_space<vmem>>, vector<128x128xf32>
    %cst_7 = arith.constant dense<0.000000e+00> : vector<8x128xf32>
    %7 = tpu.matmul %5, %6, %cst_7 {dimension_numbers = #tpu.dot_dimension_numbers<[1], [0], [0], [1], [0, 0, 1, 1], [], []>} : vector<8x128xf32>, vector<128x128xf32>, vector<8x128xf32> -> vector<8x128xf32>
    %c0_8 = arith.constant 0 : index
    %c0_9 = arith.constant 0 : index
    %8 = vector.load %arg5[%c0_8, %c0_9] : memref<1x128xf32, #tpu.memory_space<vmem>>, vector<1x128xf32>
    %9 = vector.broadcast %8 : vector<1x128xf32> to vector<8x128xf32>
    %10 = arith.addf %7, %9 : vector<8x128xf32>
    %cst_10 = arith.constant dense<0xFF800000> : vector<8xf32>
    %11 = vector.multi_reduction <maximumf>, %10, %cst_10 [1] : vector<8x128xf32> to vector<8xf32>
    %12 = vector.shape_cast %11 : vector<8xf32> to vector<8x1xf32>
    %13 = vector.broadcast %12 : vector<8x1xf32> to vector<8x128xf32>
    %14 = arith.subf %10, %13 : vector<8x128xf32>
    %15 = math.exp %14 : vector<8x128xf32>
    %cst_11 = arith.constant dense<0.000000e+00> : vector<8xf32>
    %16 = vector.multi_reduction <add>, %15, %cst_11 [1] : vector<8x128xf32> to vector<8xf32>
    %17 = vector.shape_cast %16 : vector<8xf32> to vector<8x1xf32>
    %18 = math.log %17 : vector<8x1xf32>
    %19 = vector.broadcast %18 : vector<8x1xf32> to vector<8x128xf32>
    %20 = arith.subf %14, %19 : vector<8x128xf32>
    %c0_12 = arith.constant 0 : index
    %c0_13 = arith.constant 0 : index
    %21 = vector.load %arg6[%c0_12, %c0_13] : memref<8x128xf32, #tpu.memory_space<vmem>>, vector<8x128xf32>
    tpu.vector_store %arg6[%c0_12, %c0_13], %20 {strides = array<i32>} : memref<8x128xf32, #tpu.memory_space<vmem>>, vector<8x128xf32>,
    return
  }
  func.func @transform_0(%arg0: i32) -> (i32, i32) {
    %c0_i32 = arith.constant 0 : i32
    %c0_i32_0 = arith.constant 0 : i32
    return %arg0, %c0_i32 : i32, i32
  }
  func.func @transform_1(%arg0: i32) -> (i32, i32) {
    %c0_i32 = arith.constant 0 : i32
    %c0_i32_0 = arith.constant 0 : i32
    %c0_i32_1 = arith.constant 0 : i32
    return %c0_i32, %c0_i32_0 : i32, i32
  }
  func.func @transform_2(%arg0: i32) -> (i32, i32) {
    %c0_i32 = arith.constant 0 : i32
    %c0_i32_0 = arith.constant 0 : i32
    %c0_i32_1 = arith.constant 0 : i32
    return %c0_i32, %c0_i32_0 : i32, i32
  }
  func.func @transform_3(%arg0: i32) -> (i32, i32) {
    %c0_i32 = arith.constant 0 : i32
    %c0_i32_0 = arith.constant 0 : i32
    %c0_i32_1 = arith.constant 0 : i32
    return %c0_i32, %c0_i32_0 : i32, i32
  }
  func.func @transform_4(%arg0: i32) -> (i32, i32) {
    %c0_i32 = arith.constant 0 : i32
    %c0_i32_0 = arith.constant 0 : i32
    %c0_i32_1 = arith.constant 0 : i32
    return %c0_i32, %c0_i32_0 : i32, i32
  }
  func.func @transform_5(%arg0: i32) -> (i32, i32) {
    %c0_i32 = arith.constant 0 : i32
    %c0_i32_0 = arith.constant 0 : i32
    return %arg0, %c0_i32 : i32, i32
  }
}

</mosaic_0001>

<llo_original>
// kernel: ann_forward.1
$region0: #{ann_forward.1}
  #allocation0 [shape = 'u32[]', space=smem, size = 0x4, offset = 0x4, fixed_abs, tag = 'smem constant byte address 0x4 - core index']
  #allocation1 [shape = 'u32[144,128]{1,0:T(1,128)}', space=vmem, size = 0x12000, scoped, tag = 'internal scratch']
  %s0 = inlined_call_operand.vmem [shape: f32[8,32], index: 0, kind: input, shape index: {}]
  %s1 = inlined_call_operand.vmem [shape: f32[32,128], index: 1, kind: input, shape index: {}]
  %s2 = inlined_call_operand.vmem [shape: f32[1,128], index: 2, kind: input, shape index: {}]
  %s3 = inlined_call_operand.vmem [shape: f32[128,128], index: 3, kind: input, shape index: {}]
  %s4 = inlined_call_operand.vmem [shape: f32[1,128], index: 4, kind: input, shape index: {}]
  %s5 = inlined_call_operand.vmem [shape: f32[8,128], index: 5, kind: output, shape index: {}]
  %s6 = sld [smem:[#allocation0]]
  $region30: #{ann_forward.1} parent=0
    _
  %s8 = ssub.s32 1, %s6
  %s9 = scalar_select 0, %s8, %s6
  // Predicated region
  $region2: #{ann_forward.1} parent=0 // pred_check
    _
  $region3: #{ann_forward.1} parent=0 // pred_check_branch
    %11 = sbr.rel (0) target = $region5
  $region4: #{ann_forward.1} parent=0 // pred_region
    _
  $region5: #{ann_forward.1} parent=0 // pred_fallthru
    _
  // Predicated region
  $region6: #{ann_forward.1} parent=0 // pred_check
    _
  $region7: #{ann_forward.1} parent=0 // pred_check_branch
    %13 = sbr.rel (0) target = $region9
  $region8: #{ann_forward.1} parent=0 // pred_region
    _
  $region9: #{ann_forward.1} parent=0 // pred_fallthru
    _
  // Predicated region
  $region10: #{ann_forward.1} parent=0 // pred_check
    _
  $region11: #{ann_forward.1} parent=0 // pred_check_branch
    %15 = sbr.rel (0) target = $region13
  $region12: #{ann_forward.1} parent=0 // pred_region
    _
  $region13: #{ann_forward.1} parent=0 // pred_fallthru
    _
  // Predicated region
  $region14: #{ann_forward.1} parent=0 // pred_check
    _
  $region15: #{ann_forward.1} parent=0 // pred_check_branch
    %17 = sbr.rel (0) target = $region17
  $region16: #{ann_forward.1} parent=0 // pred_region
    _
  $region17: #{ann_forward.1} parent=0 // pred_fallthru
    _
  // Predicated region
  $region18: #{ann_forward.1} parent=0 // pred_check
    _
  $region19: #{ann_forward.1} parent=0 // pred_check_branch
    %19 = sbr.rel (0) target = $region21
  $region20: #{ann_forward.1} parent=0 // pred_region
    _
  $region21: #{ann_forward.1} parent=0 // pred_fallthru
    _
  %v20 = vld [vmem:[%s0] sm:$0xff]
  %v21 = vld [vmem:[%s1] sm:$0xff]
  %v22 = vld [vmem:[%s1 + $0x8] sm:$0xff]
  %v23 = vld [vmem:[%s1 + $0x10] sm:$0xff]
  %v24 = vld [vmem:[%s1 + $0x18] sm:$0xff]
  %v25 = vld [vmem:[%s2] sm:$0x1]
  %v27 = vlaneseq
  %v28 = vshrl.u32 %v27, 7
  %v29 = vsub.s32 0, %v28
  %v30 = vrot.slane %v25, %v29
  %vm32 = vcmask 261120
  %v34 = vsel %vm32, %v20, 0
  %36 = vmatprep.subr.mxu0 0.0
  %37 = vmatpush1.msra.mxu0 0.0
  %38 = vmatprep.subr.mxu0 0.0
  %39 = vmatpush1.msra.mxu0 0.0
  %40 = vmatprep.subr.mxu0 0.0
  %41 = vmatpush1.msra.mxu0 0.0
  %42 = vmatprep.subr.mxu0 0.0
  %43 = vmatpush1.msra.mxu0 0.0
  %44 = vmatprep.subr.mxu0 0.0
  %45 = vmatpush1.msra.mxu0 0.0
  %46 = vmatprep.subr.mxu0 0.0
  %47 = vmatpush1.msra.mxu0 0.0
  %48 = vmatprep.subr.mxu0 0.0
  %49 = vmatpush1.msra.mxu0 0.0
  %50 = vmatprep.subr.mxu0 0.0
  %51 = vmatpush1.msra.mxu0 0.0
  %52 = vmatprep.subr.mxu0 0.0
  %53 = vmatpush1.msra.mxu0 0.0
  %54 = vmatprep.subr.mxu0 0.0
  %55 = vmatpush1.msra.mxu0 0.0
  %56 = vmatprep.subr.mxu0 0.0
  %57 = vmatpush1.msra.mxu0 0.0
  %58 = vmatprep.subr.mxu0 0.0
  %59 = vmatpush1.msra.mxu0 0.0
  %60 = vmatprep.subr.mxu0 0.0
  %61 = vmatpush1.msra.mxu0 %v24
  %62 = vmatprep.subr.mxu0 0.0
  %63 = vmatpush1.msra.mxu0 %v23
  %64 = vmatprep.subr.mxu0 0.0
  %65 = vmatpush1.msra.mxu0 %v22
  %66 = vmatprep.subr.mxu0 0.0
  %67 = vmatpush1.msra.mxu0 %v21
  %68 = vmatprep.subr.mxu0 0.0
  %69 = vmatpush2.msra.mxu0 0.0
  %70 = vmatprep.subr.mxu0 0.0
  %71 = vmatpush2.msra.mxu0 0.0
  %72 = vmatprep.subr.mxu0 0.0
  %73 = vmatpush2.msra.mxu0 0.0
  %74 = vmatprep.subr.mxu0 0.0
  %75 = vmatpush2.msra.mxu0 0.0
  %76 = vmatprep.subr.mxu0 0.0
  %77 = vmatpush2.msra.mxu0 0.0
  %78 = vmatprep.subr.mxu0 0.0
  %79 = vmatpush2.msra.mxu0 0.0
  %80 = vmatprep.subr.mxu0 0.0
  %81 = vmatpush2.msra.mxu0 0.0
  %82 = vmatprep.subr.mxu0 0.0
  %83 = vmatpush2.msra.mxu0 0.0
  %84 = vmatprep.subr.mxu0 0.0
  %85 = vmatpush2.msra.mxu0 0.0
  %86 = vmatprep.subr.mxu0 0.0
  %87 = vmatpush2.msra.mxu0 0.0
  %88 = vmatprep.subr.mxu0 0.0
  %89 = vmatpush2.msra.mxu0 0.0
  %90 = vmatprep.subr.mxu0 0.0
  %91 = vmatpush2.msra.mxu0 0.0
  %92 = vmatprep.subr.mxu0 0.0
  %93 = vmatpush2.msra.mxu0 0.0
  %94 = vmatprep.subr.mxu0 0.0
  %95 = vmatpush2.msra.mxu0 0.0
  %96 = vmatprep.subr.mxu0 0.0
  %97 = vmatpush2.msra.mxu0 0.0
  %98 = vmatprep.subr.mxu0 0.0
  %99 = vmatpush2.msra.mxu0 0.0
  %100 = vmatprep.mubr.f32.mxu0 0.0
  %101 = vmatmul.mubr.f32.gmra.mxu0 %v34
  %v102 = vpop.f32.mrf.mxu0
  %v103 = vadd.f32 %v30, %v102
  %v104 = vpop.f32.mrf.mxu0
  %105 = vdwg.mxu0
  %v106 = vld [vmem:[%s3] sm:$0xff]
  %v107 = vld [vmem:[%s3 + $0x8] sm:$0xff]
  %v108 = vld [vmem:[%s3 + $0x10] sm:$0xff]
  %v109 = vld [vmem:[%s3 + $0x18] sm:$0xff]
  %v110 = vld [vmem:[%s3 + $0x20] sm:$0xff]
  %v111 = vld [vmem:[%s3 + $0x28] sm:$0xff]
  %v112 = vld [vmem:[%s3 + $0x30] sm:$0xff]
  %v113 = vld [vmem:[%s3 + $0x38] sm:$0xff]
  %v114 = vld [vmem:[%s3 + $0x40] sm:$0xff]
  %v115 = vld [vmem:[%s3 + $0x48] sm:$0xff]
  %v116 = vld [vmem:[%s3 + $0x50] sm:$0xff]
  %v117 = vld [vmem:[%s3 + $0x58] sm:$0xff]
  %v118 = vld [vmem:[%s3 + $0x60] sm:$0xff]
  %v119 = vld [vmem:[%s3 + $0x68] sm:$0xff]
  %v120 = vld [vmem:[%s3 + $0x70] sm:$0xff]
  %v121 = vld [vmem:[%s3 + $0x78] sm:$0xff]
  %v122 = vld [vmem:[%s4] sm:$0x1]
  %v124 = vlaneseq
  %v125 = vshrl.u32 %v124, 7
  %v126 = vsub.s32 0, %v125
  %v127 = vrot.slane %v122, %v126
  %129 = vmatprep.subr.mxu0 0.0
  %130 = vmatpush1.msra.mxu0 %v121
  %131 = vmatprep.subr.mxu0 0.0
  %132 = vmatpush1.msra.mxu0 %v120
  %133 = vmatprep.subr.mxu0 0.0
  %134 = vmatpush1.msra.mxu0 %v119
  %135 = vmatprep.subr.mxu0 0.0
  %136 = vmatpush1.msra.mxu0 %v118
  %137 = vmatprep.subr.mxu0 0.0
  %138 = vmatpush1.msra.mxu0 %v117
  %139 = vmatprep.subr.mxu0 0.0
  %140 = vmatpush1.msra.mxu0 %v116
  %141 = vmatprep.subr.mxu0 0.0
  %142 = vmatpush1.msra.mxu0 %v115
  %143 = vmatprep.subr.mxu0 0.0
  %144 = vmatpush1.msra.mxu0 %v114
  %145 = vmatprep.subr.mxu0 0.0
  %146 = vmatpush1.msra.mxu0 %v113
  %147 = vmatprep.subr.mxu0 0.0
  %148 = vmatpush1.msra.mxu0 %v112
  %149 = vmatprep.subr.mxu0 0.0
  %150 = vmatpush1.msra.mxu0 %v111
  %151 = vmatprep.subr.mxu0 0.0
  %152 = vmatpush1.msra.mxu0 %v110
  %153 = vmatprep.subr.mxu0 0.0
  %154 = vmatpush1.msra.mxu0 %v109
  %155 = vmatprep.subr.mxu0 0.0
  %156 = vmatpush1.msra.mxu0 %v108
  %157 = vmatprep.subr.mxu0 0.0
  %158 = vmatpush1.msra.mxu0 %v107
  %159 = vmatprep.subr.mxu0 0.0
  %160 = vmatpush1.msra.mxu0 %v106
  %161 = vmatprep.subr.mxu0 0.0
  %162 = vmatpush2.msra.mxu0 0.0
  %163 = vmatprep.subr.mxu0 0.0
  %164 = vmatpush2.msra.mxu0 0.0
  %165 = vmatprep.subr.mxu0 0.0
  %166 = vmatpush2.msra.mxu0 0.0
  %167 = vmatprep.subr.mxu0 0.0
  %168 = vmatpush2.msra.mxu0 0.0
  %169 = vmatprep.subr.mxu0 0.0
  %170 = vmatpush2.msra.mxu0 0.0
  %171 = vmatprep.subr.mxu0 0.0
  %172 = vmatpush2.msra.mxu0 0.0
  %173 = vmatprep.subr.mxu0 0.0
  %174 = vmatpush2.msra.mxu0 0.0
  %175 = vmatprep.subr.mxu0 0.0
  %176 = vmatpush2.msra.mxu0 0.0
  %177 = vmatprep.subr.mxu0 0.0
  %178 = vmatpush2.msra.mxu0 0.0
  %179 = vmatprep.subr.mxu0 0.0
  %180 = vmatpush2.msra.mxu0 0.0
  %181 = vmatprep.subr.mxu0 0.0
  %182 = vmatpush2.msra.mxu0 0.0
  %183 = vmatprep.subr.mxu0 0.0
  %184 = vmatpush2.msra.mxu0 0.0
  %185 = vmatprep.subr.mxu0 0.0
  %186 = vmatpush2.msra.mxu0 0.0
  %187 = vmatprep.subr.mxu0 0.0
  %188 = vmatpush2.msra.mxu0 0.0
  %189 = vmatprep.subr.mxu0 0.0
  %190 = vmatpush2.msra.mxu0 0.0
  %191 = vmatprep.subr.mxu0 0.0
  %192 = vmatpush2.msra.mxu0 0.0
  %193 = vmatprep.mubr.f32.mxu0 0.0
  %194 = vmatmul.mubr.f32.gmra.mxu0 %v103
  %v195 = vpop.f32.mrf.mxu0
  %v196 = vadd.f32 %v127, %v195
  %v197 = vpop.f32.mrf.mxu0
  %198 = vdwg.mxu0
  %199 = vmax.xlane.f32.xlu0 %v196
  %v200 = vpop.xlane.xlu0 %199
  %v201 = vsub.f32 %v196, %v200
  %v202 = vmul.f32 %v201, 1.442695
  %v203 = vpow.pop %v202
  %204 = vadd.xlane.f32.xlu0 %v203
  %v205 = vpop.xlane.xlu0 %204
  %v206 = vlog2.pop %v205
  %v207 = vmul.f32 %v206, 0.6931472
  %v208 = vsub.f32 %v201, %v207
  %209 = vst [vmem:[%s5] sm:$0xff] %v208
  // Predicated region
  $region22: #{ann_forward.1} parent=0 // pred_check
    _
  $region23: #{ann_forward.1} parent=0 // pred_check_branch
    %211 = sbr.rel (0) target = $region25
  $region24: #{ann_forward.1} parent=0 // pred_region
    _
  $region25: #{ann_forward.1} parent=0 // pred_fallthru
    _
  // Predicated region
  $region26: #{ann_forward.1} parent=0 // pred_check
    _
  $region27: #{ann_forward.1} parent=0 // pred_check_branch
    %213 = sbr.rel (0) target = $region29
  $region28: #{ann_forward.1} parent=0 // pred_region
    _
  $region29: #{ann_forward.1} parent=0 // pred_fallthru
    _

</llo_original>
